<compile_context>
chip_gen: v7x
topology: tpu7x:2x2x1
jax: 0.10.0
libtpu: 0.0.40
codegen_flags: <defaults>
</compile_context>

<pallas_src>
import functools

import jax
import jax.numpy as jnp
from jax.experimental import pallas as pl
from jax.experimental.pallas import tpu as pltpu


def _matmul_bias_relu_kernel(x_ref, w_ref, *rest, relu, has_bias):
    """Fused (Cout, K) x (K, hw_blk) matmul + bias + ReLU for one grid step.

    x_ref: (1, K, hw_blk)   im2col patches (compute dtype, e.g. bf16)
    w_ref: (Cout, K)        reshaped conv weight (compute dtype)
    b_ref: (Cout, 1)        f32 bias (present only when has_bias)
    o_ref: (1, Cout, hw_blk)
    """
    if has_bias:
        b_ref, o_ref = rest
    else:
        (o_ref,) = rest

    # Single MXU push per step, f32 accumulation; (Cout, hw_blk) is lane-dense.
    acc = jnp.dot(w_ref[...], x_ref[0], preferred_element_type=jnp.float32)
    if has_bias:
        acc = acc + b_ref[...].astype(jnp.float32)  # broadcast along lanes
    if relu:
        acc = jnp.maximum(acc, 0.0)
    o_ref[0] = acc.astype(o_ref.dtype)


def _pick_hw_block(hw_pad, target):
    """Largest multiple-of-128 divisor of `hw_pad` not exceeding `target`.

    `hw_pad` is always a multiple of 128, so 128 is a guaranteed fallback.
    """
    if hw_pad <= target:
        return hw_pad
    cand = target - target % 128
    while cand >= 128:
        if hw_pad % cand == 0:
            return cand
        cand -= 128
    return 128


def basic_conv_forward(x_nchw, weight_oihw, bias=None, *, stride=1, padding=1,
                       dilation=1, groups=1, relu=True,
                       compute_dtype=jnp.bfloat16, hw_block=8192):
    """BasicConv forward (default path): conv2d [+ bias] [+ ReLU], NCHW in/out."""
    N, Cin, H, W = x_nchw.shape
    Cout, Cin_w, KH, KW = weight_oihw.shape
    assert groups == 1 and Cin == Cin_w, "groups != 1 not supported"

    # Spatial zero-pad; layout stays NCHW (no transposes anywhere).
    x_pad = jnp.pad(
        x_nchw, ((0, 0), (0, 0), (padding, padding), (padding, padding)))
    Hp, Wp = H + 2 * padding, W + 2 * padding
    H_out = (Hp - dilation * (KH - 1) - 1) // stride + 1
    W_out = (Wp - dilation * (KW - 1) - 1) // stride + 1
    HW = H_out * W_out
    K = KH * KW * Cin

    # im2col: (N, K, H_out*W_out), tap order (kh, kw, cin).
    taps = []
    for kh in range(KH):
        for kw in range(KW):
            h0, w0 = kh * dilation, kw * dilation
            taps.append(x_pad[:, :,
                              h0:h0 + stride * (H_out - 1) + 1:stride,
                              w0:w0 + stride * (W_out - 1) + 1:stride])
    x_col = jnp.stack(taps, axis=1).reshape(N, K, HW).astype(compute_dtype)

    # Pad H*W up to a multiple of 128 so output stores are unmasked lane-dense
    # vst for any spatial size; extra columns are zero and sliced off below.
    HW_pad = ((HW + 127) // 128) * 128
    if HW_pad != HW:
        x_col = jnp.pad(x_col, ((0, 0), (0, 0), (0, HW_pad - HW)))

    # (Cout, Cin, KH, KW) -> (Cout, KH, KW, Cin) -> (Cout, K): matches tap order.
    w_mat = jnp.transpose(weight_oihw, (0, 2, 3, 1)).reshape(Cout, K)
    w_mat = w_mat.astype(compute_dtype)

    hw_blk = _pick_hw_block(HW_pad, hw_block)
    num_hw = HW_pad // hw_blk

    has_bias = bias is not None
    inputs = [x_col, w_mat]
    in_specs = [
        pl.BlockSpec((1, K, hw_blk), lambda n, t: (n, 0, t)),
        pl.BlockSpec((Cout, K), lambda n, t: (0, 0)),
    ]
    if has_bias:
        inputs.append(bias.reshape(Cout, 1).astype(jnp.float32))
        in_specs.append(pl.BlockSpec((Cout, 1), lambda n, t: (0, 0)))

    kernel = functools.partial(
        _matmul_bias_relu_kernel, relu=relu, has_bias=has_bias)

    itemsize = jnp.dtype(compute_dtype).itemsize
    cost = pl.CostEstimate(
        flops=2 * N * Cout * K * HW_pad,
        transcendentals=0,
        bytes_accessed=(N * K * HW_pad * itemsize + Cout * K * itemsize
                        + N * Cout * HW_pad * x_nchw.dtype.itemsize))

    out = pl.pallas_call(
        kernel,
        out_shape=jax.ShapeDtypeStruct((N, Cout, HW_pad), x_nchw.dtype),
        grid_spec=pltpu.PrefetchScalarGridSpec(
            num_scalar_prefetch=0,
            grid=(N, num_hw),
            in_specs=in_specs,
            out_specs=pl.BlockSpec((1, Cout, hw_blk), lambda n, t: (n, 0, t)),
        ),
        compiler_params=pltpu.CompilerParams(
            dimension_semantics=("parallel", "parallel")),
        cost_estimate=cost,
    )(*inputs)

    # Drop lane padding, then lane-dense (N, Cout, H*W) -> NCHW (free reshape).
    if HW_pad != HW:
        out = out[:, :, :HW]
    return out.reshape(N, Cout, H_out, W_out)


if __name__ == "__main__":
    # BasicConv(in_planes=4, out_planes=8, kernel_size=3) with defaults:
    # stride=1, padding=1, dilation=1, groups=1, relu=True, bn=False,
    # bias=False, up_size=0, fan=False.
    N, Cin, H, W = 2, 4, 16, 16
    Cout, KH, KW = 8, 3, 3
    padding = 1

    key = jax.random.PRNGKey(0)
    kx, kw = jax.random.split(key)
    x = jax.random.normal(kx, (N, Cin, H, W), dtype=jnp.float32)
    # Deterministic Kaiming-uniform-like init (same shape as nn.Conv2d weight).
    fan_in = Cin * KH * KW
    bound = (1.0 / fan_in) ** 0.5
    weight = jax.random.uniform(
        kw, (Cout, Cin, KH, KW), dtype=jnp.float32, minval=-bound, maxval=bound)

    out = basic_conv_forward(x, weight, bias=None, padding=padding, relu=True)
    out = jax.block_until_ready(out)

    # Reference: same bf16-rounded inputs (the kernel feeds the MXU bf16 with
    # f32 accumulation), exact f32 conv + ReLU via XLA.
    x_r = x.astype(jnp.bfloat16).astype(jnp.float32)
    w_r = weight.astype(jnp.bfloat16).astype(jnp.float32)
    ref = jax.lax.conv_general_dilated(
        x_r, w_r, window_strides=(1, 1),
        padding=[(padding, padding), (padding, padding)],
        dimension_numbers=("NCHW", "OIHW", "NCHW"),
        precision=jax.lax.Precision.HIGHEST)
    ref = jnp.maximum(ref, 0.0)

    assert out.shape == ref.shape, (out.shape, ref.shape)
    max_err = float(jnp.max(jnp.abs(out - ref)))
    assert jnp.allclose(out, ref, atol=1e-3, rtol=1e-3), max_err

    print("KERNEL_OK")
</pallas_src>

<mosaic_0001>
module attributes {stable_mosaic.version = 11 : i64} {
  func.func @_matmul_bias_relu_kernel(%arg0: i32, %arg1: i32, %arg2: memref<1x36x256xbf16, #tpu.memory_space<vmem>>, %arg3: memref<8x36xbf16, #tpu.memory_space<vmem>>, %arg4: memref<1x8x256xf32, #tpu.memory_space<vmem>>) attributes {dimension_semantics = [#tpu.dimension_semantics<parallel>, #tpu.dimension_semantics<parallel>], iteration_bounds = array<i64: 2, 1>, scalar_prefetch = 0 : i64, scratch_operands = 0 : i64, tpu.core_type = #tpu.core_type<tc>, window_params = [{transform_indices = @transform_0, window_bounds = array<i64: 1, 36, 256>}, {pipeline_mode = #tpu.pipeline_mode<synchronous>, transform_indices = @transform_1, window_bounds = array<i64: 8, 36>}, {transform_indices = @transform_2, window_bounds = array<i64: 1, 8, 256>}]} {
    %c0 = arith.constant 0 : index
    %c0_0 = arith.constant 0 : index
    %0 = vector.load %arg3[%c0, %c0_0] : memref<8x36xbf16, #tpu.memory_space<vmem>>, vector<8x36xbf16>
    %c0_1 = arith.constant 0 : index
    %c0_2 = arith.constant 0 : index
    %c0_3 = arith.constant 0 : index
    %1 = vector.load %arg2[%c0_1, %c0_2, %c0_3] : memref<1x36x256xbf16, #tpu.memory_space<vmem>>, vector<1x36x256xbf16>
    %2 = vector.shape_cast %1 : vector<1x36x256xbf16> to vector<36x256xbf16>
    %cst = arith.constant dense<0.000000e+00> : vector<8x256xf32>
    %3 = tpu.matmul %0, %2, %cst {dimension_numbers = #tpu.dot_dimension_numbers<[1], [0], [0], [1], [0, 0, 1, 1], [], []>} : vector<8x36xbf16>, vector<36x256xbf16>, vector<8x256xf32> -> vector<8x256xf32>
    %cst_4 = arith.constant 0.000000e+00 : f32
    %4 = vector.broadcast %cst_4 : f32 to vector<8x256xf32>
    %5 = arith.maximumf %3, %4 : vector<8x256xf32>
    %c0_5 = arith.constant 0 : index
    %c0_6 = arith.constant 0 : index
    %c0_7 = arith.constant 0 : index
    %6 = vector.load %arg4[%c0_5, %c0_6, %c0_7] : memref<1x8x256xf32, #tpu.memory_space<vmem>>, vector<1x8x256xf32>
    %7 = vector.shape_cast %6 : vector<1x8x256xf32> to vector<8x256xf32>
    %8 = vector.shape_cast %5 : vector<8x256xf32> to vector<1x8x256xf32>
    tpu.vector_store %arg4[%c0_5, %c0_6, %c0_7], %8 {strides = array<i32>} : memref<1x8x256xf32, #tpu.memory_space<vmem>>, vector<1x8x256xf32>,
    return
  }
  func.func @transform_0(%arg0: i32, %arg1: i32) -> (i32, i32, i32) {
    %c0_i32 = arith.constant 0 : i32
    %c0_i32_0 = arith.constant 0 : i32
    return %arg0, %c0_i32, %arg1 : i32, i32, i32
  }
  func.func @transform_1(%arg0: i32, %arg1: i32) -> (i32, i32) {
    %c0_i32 = arith.constant 0 : i32
    %c0_i32_0 = arith.constant 0 : i32
    %c0_i32_1 = arith.constant 0 : i32
    return %c0_i32, %c0_i32_0 : i32, i32
  }
  func.func @transform_2(%arg0: i32, %arg1: i32) -> (i32, i32, i32) {
    %c0_i32 = arith.constant 0 : i32
    %c0_i32_0 = arith.constant 0 : i32
    return %arg0, %c0_i32, %arg1 : i32, i32, i32
  }
}

</mosaic_0001>

<llo_original>
// kernel: tpu_custom_call.1
$region0: #{tpu_custom_call.1}
  #allocation0 [shape = 'u32[]', space=smem, size = 0x4, offset = 0x4, fixed_abs, tag = 'smem constant byte address 0x4 - core index']
  #allocation1 [shape = 'u32[144,128]{1,0:T(1,128)}', space=vmem, size = 0x12000, scoped, tag = 'internal scratch']
  %s0 = inlined_call_operand.vmem [shape: bf16[2,36,256], index: 0, kind: input, shape index: {}]
  %s1 = inlined_call_operand.vmem [shape: bf16[8,36], index: 1, kind: input, shape index: {}]
  %s2 = inlined_call_operand.hbm [shape: f32[2,8,256], index: 2, kind: output, shape index: {}]
  %s3 = sld [smem:[#allocation0]]
  $region41: #{tpu_custom_call.1} parent=0
    _
  %s5 = ssub.s32 1, %s3
  %s6 = scalar_select 0, %s5, %s3
  $region1: #{tpu_custom_call.1} parent=0
    #allocation2 [shape = 'u8[16384]{0}', space=vmem, size = 0x4000, scoped, tag = 'output window, operand 0']
    #allocation3 [shape = 's32[2]{0}', space=sflag, size = 0x8, scoped, tag = 'scoped memory for tpu_custom_call.1']
    %7 = vsyncpa [#allocation3], 0
    %s8 = scalar_lea.sflag [#allocation3], 1
    %9 = vsyncpa %s8, 0
    loop: start=0, step=1, limit=4
    $region2: #{tpu_custom_call.1} parent=1 // loop_pre_header
      _
    $region3: #{tpu_custom_call.1} parent=1 // loop_header
      %s11 = sphi 0, %s15
      %p12 = scmp.ge.s32.totalorder %s11, 4
      %s18 = sphi 0, %s30
      %s19 = sphi 0, %s26
      %s20 = sphi 0, %s18
      %s21 = sphi 0, %s19
      %s22 = sphi 0, %s20
      %s23 = sphi 0, %s21
      %s35 = sphi 0, %s37
      %s38 = sphi 0, %s35
      %s39 = sphi 0, %s38
      %s55 = sphi 0, %s39
      %s59 = sphi 0, %s59
      %s61 = sphi 0, %s59
      %s62 = sphi 0, %s61
      %s76 = sphi 0, %s62
      %s84 = sphi 0, %s86
      %s87 = sphi 0, %s84
      %s88 = sphi 0, %s87
      %s104 = sphi 0, %s88
    $region4: #{tpu_custom_call.1} parent=1 // loop_header_branch
      %14 = sbr.rel (%p12) target = $region8
    $region5: #{tpu_custom_call.1} parent=1 // loop_body
      %s16 = ssub.s32 %s11, 1
      %s17 = ssub.s32 %s11, 2
      %s24 = sadd.s32 1, %s19
      %p25 = scmp.ge.s32.totalorder %s24, 1
      %s26 = scalar_select %p25, 0, %s24
      %s27 = sadd.s32 1, %s18
      %s28 = scalar_select %p25, %s27, %s18
      %p29 = scmp.ge.s32.totalorder %s28, 2
      %s30 = scalar_select %p29, 0, %s28
      %s31 = ssub.s32 %s18, %s30
      %s32 = ssub.s32 %s19, %s26
      %s33 = sor.u32 %s31, %s32
      %p34 = scmp.eq.s32.totalorder %s33, 0
      %s36 = sadd.s32 %s35, 1
      %s37 = scalar_select %p34, %s35, %s36
      %p40 = pneg %p34
      %p41 = scmp.eq.s32.totalorder %s11, 1
      %p42 = por %p40, %p41
      %p43 = scmp.ne.s32.totalorder %s35, %s38
      %p44 = scmp.eq.s32.totalorder %s11, 0
      %p45 = por %p43, %p44
      %p46 = scmp.ne.s32.totalorder %s35, %s38
      %p47 = scmp.eq.s32.totalorder %s16, 1
      %p48 = por %p46, %p47
      %p49 = scmp.ne.s32.totalorder %s38, %s39
      %p50 = scmp.eq.s32.totalorder %s16, 0
      %p51 = por %p49, %p50
      %p52 = scmp.ne.s32.totalorder %s38, %s39
      %p53 = scmp.eq.s32.totalorder %s17, 1
      %p54 = por %p52, %p53
      %p56 = scmp.ne.s32.totalorder %s39, %s55
      %p57 = scmp.eq.s32.totalorder %s17, 0
      %p58 = por %p56, %p57
      %s60 = sadd.s32 %s59, 1
      %p63 = scmp.eq.s32.totalorder %s11, 1
      %p64 = scmp.ne.s32.totalorder %s59, %s61
      %p65 = scmp.eq.s32.totalorder %s11, 0
      %p66 = por %p64, %p65
      %p67 = scmp.ne.s32.totalorder %s59, %s61
      %p68 = scmp.eq.s32.totalorder %s16, 1
      %p69 = por %p67, %p68
      %p70 = scmp.ne.s32.totalorder %s61, %s62
      %p71 = scmp.eq.s32.totalorder %s16, 0
      %p72 = por %p70, %p71
      %p73 = scmp.ne.s32.totalorder %s61, %s62
      %p74 = scmp.eq.s32.totalorder %s17, 1
      %p75 = por %p73, %p74
      %p77 = scmp.ne.s32.totalorder %s62, %s76
      %p78 = scmp.eq.s32.totalorder %s17, 0
      %p79 = por %p77, %p78
      %s80 = ssub.s32 %s18, %s30
      %s81 = ssub.s32 %s19, %s26
      %s82 = sor.u32 %s80, %s81
      %p83 = scmp.eq.s32.totalorder %s82, 0
      %s85 = sadd.s32 %s84, 1
      %s86 = scalar_select %p83, %s84, %s85
      %p89 = pneg %p83
      %p90 = scmp.eq.s32.totalorder %s11, 1
      %p91 = por %p89, %p90
      %p92 = scmp.ne.s32.totalorder %s84, %s87
      %p93 = scmp.eq.s32.totalorder %s11, 0
      %p94 = por %p92, %p93
      %p95 = scmp.ne.s32.totalorder %s84, %s87
      %p96 = scmp.eq.s32.totalorder %s16, 1
      %p97 = por %p95, %p96
      %p98 = scmp.ne.s32.totalorder %s87, %s88
      %p99 = scmp.eq.s32.totalorder %s16, 0
      %p100 = por %p98, %p99
      %p101 = scmp.ne.s32.totalorder %s87, %s88
      %p102 = scmp.eq.s32.totalorder %s17, 1
      %p103 = por %p101, %p102
      %p105 = scmp.ne.s32.totalorder %s88, %s104
      %p106 = scmp.eq.s32.totalorder %s17, 0
      %p107 = por %p105, %p106
      %p108 = scmp.le.s32.totalorder 1, %s11
      %p109 = scmp.lt.s32.totalorder %s11, 3
      %p110 = pnand %p108, %p109
      %p111 = pneg %p110
      // Predicated region
      $region9: #{tpu_custom_call.1} parent=5 // pred_check
        _
      $region10: #{tpu_custom_call.1} parent=5 // pred_check_branch
        %113 = sbr.rel (%p110) target = $region12
      $region11: #{tpu_custom_call.1} parent=5 // pred_region
        %s114 = ssub.s32 %s11, 1
        // Predicated region
        $region13: #{tpu_custom_call.1} parent=11 // pred_check
          %p115 = pneg %p72
        $region14: #{tpu_custom_call.1} parent=11 // pred_check_branch
          %117 = sbr.rel (%p115) target = $region16
        $region15: #{tpu_custom_call.1} parent=11 // pred_region
          _
        $region16: #{tpu_custom_call.1} parent=11 // pred_fallthru
          _
      $region12: #{tpu_custom_call.1} parent=5 // pred_fallthru
        _
      %p118 = scmp.lt.s32.totalorder %s11, 2
      // Predicated region
      $region17: #{tpu_custom_call.1} parent=5 // pred_check
        %p119 = pneg %p118
      $region18: #{tpu_custom_call.1} parent=5 // pred_check_branch
        %121 = sbr.rel (%p119) target = $region20
      $region19: #{tpu_custom_call.1} parent=5 // pred_region
        // Predicated region
        $region21: #{tpu_custom_call.1} parent=19 // pred_check
          %p122 = pneg %p45
        $region22: #{tpu_custom_call.1} parent=19 // pred_check_branch
          %124 = sbr.rel (%p122) target = $region24
        $region23: #{tpu_custom_call.1} parent=19 // pred_region
          %s125 = smul.u32 2, %s19
          %p126 = scmp.lt.s32.totalorder %s18, 1
          %s127 = scalar_select %p126, %s18, 1
          %p128 = scmp.lt.s32.totalorder %s125, 1
          %s129 = scalar_select %p128, %s125, 1
          %s130 = smul.addr %s127, 10
          %s131 = sadd.s32 %s129, %s130
          %s132 = smul.addr %s131, 4
          %s133 = scalar_lea.vmem %s0, %s132
          %s134 = smul.u32 2, %s19
        $region24: #{tpu_custom_call.1} parent=19 // pred_fallthru
          _
      $region20: #{tpu_custom_call.1} parent=5 // pred_fallthru
        _
      %p135 = scmp.le.s32.totalorder 1, %s11
      %p136 = scmp.lt.s32.totalorder %s11, 3
      %p137 = pnand %p135, %p136
      %p138 = pneg %p137
      // Predicated region
      $region25: #{tpu_custom_call.1} parent=5 // pred_check
        _
      $region26: #{tpu_custom_call.1} parent=5 // pred_check_branch
        %140 = sbr.rel (%p137) target = $region28
      $region27: #{tpu_custom_call.1} parent=5 // pred_region
        %s141 = ssub.s32 %s11, 1
        %s142 = smul.u32 2, %s21
        %p143 = scmp.lt.s32.totalorder %s20, 1
        %s144 = scalar_select %p143, %s20, 1
        %p145 = scmp.lt.s32.totalorder %s142, 1
        %s146 = scalar_select %p145, %s142, 1
        %s147 = smul.addr %s144, 10
        %s148 = sadd.s32 %s146, %s147
        %s149 = smul.addr %s148, 4
        %s150 = scalar_lea.vmem %s0, %s149
        %p151 = pneg %p51
        %p152 = pneg %p48
        %p153 = pneg %p72
        %p154 = pneg %p69
        %p155 = pneg %p100
        %p156 = pneg %p97
        %s157 = sand.u32 %s87, 1
        %s158 = scalar_lea.sflag [#allocation3], %s157
        %s159 = sand.u32 %s87, 1
        %s160 = smul.addr %s159, 16
        %s161 = scalar_lea.vmem [#allocation2], %s160
        %s162 = smul.u32 2, %s21
        %p163 = scmp.lt.s32.totalorder %s20, 1
        %s164 = scalar_select %p163, %s20, 1
        %p165 = scmp.lt.s32.totalorder %s162, 1
        %s166 = scalar_select %p165, %s162, 1
        %s167 = smul.addr %s164, 10
        %s168 = sadd.s32 %s166, %s167
        %s169 = smul.addr %s168, 4
        %s170 = scalar_lea.vmem %s0, %s169
        %s171 = smul.u32 2, %s21
        %s172 = smul.u32 2, %s21
        %v174 = vld [vmem:[%s1] sm:$0xf]
        %v175 = vld [vmem:[%s170] sm:$0xff]
        %v176 = vld [vmem:[%s170 + $0x8] sm:$0xff]
        %v177 = vld [vmem:[%s170 + $0x10] sm:$0xff]
        %v178 = vld [vmem:[%s170 + $0x18] sm:$0xff]
        %v179 = vld [vmem:[%s170 + $0x20] sm:$0x33]
        %v185 = vunpack.c.l.b16 %v175
        %v186 = vunpack.c.h.b16 %v175
        %v187 = vunpack.c.l.b16 %v176
        %v188 = vunpack.c.h.b16 %v176
        %v189 = vunpack.c.l.b16 %v177
        %v190 = vunpack.c.h.b16 %v177
        %v191 = vunpack.c.l.b16 %v178
        %v192 = vunpack.c.h.b16 %v178
        %v193 = vunpack.c.l.b16 %v179
        %v194 = vunpack.c.h.b16 %v179
        %v195 = vpack.c.b16 %v187, %v185
        %v196 = vpack.c.b16 %v188, %v186
        %v197 = vpack.c.b16 %v191, %v189
        %v198 = vpack.c.b16 %v192, %v190
        %v199 = vpack.c.b16 %v193, %v193
        %v200 = vpack.c.b16 %v194, %v194
        %vm205 = vcmask 293888
        %v207 = vsel %vm205, %v174, 0
        %vm209 = vcmask 1041408
        %v211 = vsel %vm209, %v199, 0
        %v214 = vsel %vm209, %v200, 0
        %216 = vmatprep.subr.bf16.mxu0 %v196
        %217 = vmatpush1.bf16.msra.mxu0 %v195
        %218 = vmatprep.subr.bf16.mxu0 %v198
        %219 = vmatpush1.bf16.msra.mxu0 %v197
        %220 = vmatprep.subr.bf16.mxu0 %v214
        %221 = vmatpush1.bf16.msra.mxu0 %v211
        %222 = vmatprep.subr.bf16.mxu0 0
        %223 = vmatpush1.bf16.msra.mxu0 0
        %224 = vmatprep.subr.bf16.mxu0 0
        %225 = vmatpush1.bf16.msra.mxu0 0
        %226 = vmatprep.subr.bf16.mxu0 0
        %227 = vmatpush1.bf16.msra.mxu0 0
        %228 = vmatprep.subr.bf16.mxu0 0
        %229 = vmatpush1.bf16.msra.mxu0 0
        %230 = vmatprep.subr.bf16.mxu0 0
        %231 = vmatpush1.bf16.msra.mxu0 0
        %232 = vmatprep.subr.bf16.mxu0 0
        %233 = vmatpush1.bf16.msra.mxu0 0
        %234 = vmatprep.subr.bf16.mxu0 0
        %235 = vmatpush1.bf16.msra.mxu0 0
        %236 = vmatprep.subr.bf16.mxu0 0
        %237 = vmatpush1.bf16.msra.mxu0 0
        %238 = vmatprep.subr.bf16.mxu0 0
        %239 = vmatpush1.bf16.msra.mxu0 0
        %240 = vmatprep.subr.bf16.mxu0 0
        %241 = vmatpush1.bf16.msra.mxu0 0
        %242 = vmatprep.subr.bf16.mxu0 0
        %243 = vmatpush1.bf16.msra.mxu0 0
        %244 = vmatprep.subr.bf16.mxu0 0
        %245 = vmatpush1.bf16.msra.mxu0 0
        %246 = vmatprep.subr.bf16.mxu0 0
        %247 = vmatpush1.bf16.msra.mxu0 0
        %248 = vmatprep.mubr.bf16.mxu0 0
        %249 = vmatmul.mubr.bf16.gmra.mrb[0].mxu0 %v207
        %v250 = vpop.f32.mrb[0].mxu0
        %v251 = vadd.f32 0.0, %v250
        %v252 = vpop.f32.mrb[0].mxu0
        %v253 = vadd.f32 0.0, %v252
        %v254 = vpop.f32.mrb[0].mxu0
        %v255 = vpop.f32.mrb[0].mxu0
        %256 = vdwg.mxu0
        %v257 = vmax.f32 %v251, 0.0
        %v258 = vmax.f32 %v253, 0.0
        %259 = vst [vmem:[%s161] sm:$0xff] %v257
        %260 = vst [vmem:[%s161 + $0x8] sm:$0xff] %v258
        %s261 = sand.u32 %s87, 1
        %s262 = scalar_lea.sflag [#allocation3], %s261
        %s263 = sand.u32 %s87, 1
        %s264 = smul.addr %s263, 16
        %s265 = scalar_lea.vmem [#allocation2], %s264
        // Predicated region
        $region29: #{tpu_custom_call.1} parent=27 // pred_check
          %p266 = pneg %p97
        $region30: #{tpu_custom_call.1} parent=27 // pred_check_branch
          %268 = sbr.rel (%p266) target = $region32
        $region31: #{tpu_custom_call.1} parent=27 // pred_region
          %s269 = smul.u32 2, %s21
          %s271 = ssub.s32 256, 256
          %272 = vsyncadd %s262, %s271
          %s273 = smul.addr %s20, 2
          %s274 = sadd.s32 %s269, %s273
          %s275 = smul.addr %s274, 128
          %s276 = scalar_lea.hbm %s2, %s275
          %s278 = sshll.u32 %s265, 4
          %s279 = int_to_ptr.vmem [resolvable:$true] %s278
          %281 = dma.vmem_to_hbm [thread:$0]  %s279, 256, %s276, %s262
        $region32: #{tpu_custom_call.1} parent=27 // pred_fallthru
          _
      $region28: #{tpu_custom_call.1} parent=5 // pred_fallthru
        _
      %p282 = scmp.le.s32.totalorder 2, %s11
      // Predicated region
      $region33: #{tpu_custom_call.1} parent=5 // pred_check
        %p283 = pneg %p282
      $region34: #{tpu_custom_call.1} parent=5 // pred_check_branch
        %285 = sbr.rel (%p283) target = $region36
      $region35: #{tpu_custom_call.1} parent=5 // pred_region
        %s286 = ssub.s32 %s11, 2
        // Predicated region
        $region37: #{tpu_custom_call.1} parent=35 // pred_check
          %p287 = pneg %p103
        $region38: #{tpu_custom_call.1} parent=35 // pred_check_branch
          %289 = sbr.rel (%p287) target = $region40
        $region39: #{tpu_custom_call.1} parent=35 // pred_region
          %s290 = sand.u32 %s88, 1
          %s291 = scalar_lea.sflag [#allocation3], %s290
          %s292 = sand.u32 %s88, 1
          %s293 = smul.addr %s292, 16
          %s294 = scalar_lea.vmem [#allocation2], %s293
          %295 = dma.done %s291, 256
        $region40: #{tpu_custom_call.1} parent=35 // pred_fallthru
          _
      $region36: #{tpu_custom_call.1} parent=5 // pred_fallthru
        _
    $region6: #{tpu_custom_call.1} parent=1 // loop_footer
      %s15 = sadd.s32 1, %s11
    $region7: #{tpu_custom_call.1} parent=1 // loop_footer_branch
      %10 = sbr.rel target = $region3
    $region8: #{tpu_custom_call.1} parent=1 // loop_exit
      _
    %296 = vsyncpa [#allocation3], 1
    %s297 = scalar_lea.sflag [#allocation3], 1
    %298 = vsyncpa %s297, 1

</llo_original>
